<compile_context>
chip_gen: v5e
topology: v5e:2x2
jax: 0.10.0
libtpu: 0.0.40
codegen_flags: <defaults>
</compile_context>

<pallas_src>
import functools

import jax
import jax.numpy as jnp
from jax.experimental import pallas as pl
from jax.experimental.pallas import tpu as pltpu


N_INPUT_DIM = 6
N_INPUT_LEN = 64
N_FEATURES = N_INPUT_DIM * N_INPUT_LEN  # 384
HIDDEN = 128
N_OUTPUT = 4

# Tiny batches take a single-block, no-grid path (no per-step overhead);
# anything larger uses the batch-tiled, pipelined grid path.
FAST_PATH_MAX_ROWS = 512

# Explicit scoped-VMEM budget for the gridded path: within v7x's 64 MiB
# physical VMEM, above v5e's 16 MiB / v6e-v7x's 32 MiB default scoped limits.
VMEM_LIMIT_BYTES = 48 * 1024 * 1024


def hapticnet_kernel(x_ref, w1_ref, b1_ref, w2_ref, b2_ref, w3_ref, b3_ref,
                     o_ref):
    # x: (TB, 384) native dtype (f32) -> cast to bf16 in-kernel (VPU, free
    # under DMA slack).  Weights (in, out) bf16, biases (1, out) f32.
    x = x_ref[...].astype(jnp.bfloat16)

    # Fused dot + bias + ReLU + bf16 downcast: f32 hidden slabs never persist.
    h1 = jnp.maximum(
        jnp.dot(x, w1_ref[...], preferred_element_type=jnp.float32)
        + b1_ref[...], 0.0).astype(jnp.bfloat16)

    h2 = jnp.maximum(
        jnp.dot(h1, w2_ref[...], preferred_element_type=jnp.float32)
        + b2_ref[...], 0.0).astype(jnp.bfloat16)

    logits = jnp.dot(h2, w3_ref[...],
                     preferred_element_type=jnp.float32) + b3_ref[...]

    # LogSoftmax over dim=1 (the class axis), numerically stable, in f32.
    m = jnp.max(logits, axis=-1, keepdims=True)
    shifted = logits - m
    lse = jnp.log(jnp.sum(jnp.exp(shifted), axis=-1, keepdims=True))
    o_ref[...] = (shifted - lse).astype(o_ref.dtype)


def prepare_params(w1, b1, w2, b2, w3, b3):
    """One-time (model-load) parameter cast: bf16 weights, f32 (1,out) biases.

    Hoisted out of the per-call path so no cast copies are re-materialized in
    HBM on every forward call.
    """
    return (w1.astype(jnp.bfloat16), b1.reshape(1, -1).astype(jnp.float32),
            w2.astype(jnp.bfloat16), b2.reshape(1, -1).astype(jnp.float32),
            w3.astype(jnp.bfloat16), b3.reshape(1, -1).astype(jnp.float32))


@functools.partial(jax.jit, static_argnames=("block_rows",))
def hapticnet_forward(haptic_data, w1, b1, w2, b2, w3, b3, *, block_rows=4096):
    """haptic_data: (B, 6, 64) -> (B, 4) log-probabilities (f32).

    Weights/biases must come from prepare_params() (bf16 / f32).  haptic_data
    is consumed in its native dtype; the bf16 cast happens inside the kernel.
    """
    x = haptic_data.reshape(-1, N_FEATURES)
    batch = x.shape[0]

    out_shape = jax.ShapeDtypeStruct((batch, N_OUTPUT), jnp.float32)

    if batch <= min(block_rows, FAST_PATH_MAX_ROWS):
        # Tiny-batch fast path: single VMEM block, no grid-step overhead.
        vmem = pl.BlockSpec(memory_space=pltpu.MemorySpace.VMEM)
        return pl.pallas_call(
            hapticnet_kernel,
            out_shape=out_shape,
            in_specs=[vmem] * 7,
            out_specs=vmem,
        )(x, w1, b1, w2, b2, w3, b3)

    # Batch-tiled path: x/out tiled over the batch (double-buffered DMA /
    # compute overlap), weights resident in VMEM across grid steps.
    grid = (pl.cdiv(batch, block_rows),)

    def resident(shape):
        return pl.BlockSpec(shape, lambda i: (0, 0))

    return pl.pallas_call(
        hapticnet_kernel,
        out_shape=out_shape,
        grid=grid,
        in_specs=[
            pl.BlockSpec((block_rows, N_FEATURES), lambda i: (i, 0)),  # x
            resident((N_FEATURES, HIDDEN)),                            # w1
            resident((1, HIDDEN)),                                     # b1
            resident((HIDDEN, HIDDEN)),                                # w2
            resident((1, HIDDEN)),                                     # b2
            resident((HIDDEN, N_OUTPUT)),                              # w3
            resident((1, N_OUTPUT)),                                   # b3
        ],
        out_specs=pl.BlockSpec((block_rows, N_OUTPUT), lambda i: (i, 0)),
        compiler_params=pltpu.CompilerParams(
            dimension_semantics=("parallel",),
            vmem_limit_bytes=VMEM_LIMIT_BYTES),
    )(x, w1, b1, w2, b2, w3, b3)


def init_params(key):
    """Deterministic synthetic parameters (shapes from HapticNet.__init__)."""
    ks = jax.random.split(key, 6)

    # torch Linear init scale ~ 1/sqrt(fan_in); transposed layout (in, out).
    def lin(kw, kb, fan_in, fan_out):
        bound = 1.0 / jnp.sqrt(jnp.float32(fan_in))
        w = jax.random.uniform(kw, (fan_in, fan_out), jnp.float32, -bound, bound)
        b = jax.random.uniform(kb, (1, fan_out), jnp.float32, -bound, bound)
        return w, b

    w1, b1 = lin(ks[0], ks[1], N_FEATURES, HIDDEN)
    w2, b2 = lin(ks[2], ks[3], HIDDEN, HIDDEN)
    w3, b3 = lin(ks[4], ks[5], HIDDEN, N_OUTPUT)
    return w1, b1, w2, b2, w3, b3


def reference_forward(haptic_data, w1, b1, w2, b2, w3, b3):
    """Pure-JAX reference at the same (bf16 matmul / f32 accum) precision.

    Takes the same pre-cast params as hapticnet_forward.
    """
    x = haptic_data.reshape(-1, N_FEATURES).astype(jnp.bfloat16)
    h1 = jnp.maximum(
        jnp.dot(x, w1, preferred_element_type=jnp.float32) + b1,
        0.0).astype(jnp.bfloat16)
    h2 = jnp.maximum(
        jnp.dot(h1, w2, preferred_element_type=jnp.float32) + b2,
        0.0).astype(jnp.bfloat16)
    logits = jnp.dot(h2, w3, preferred_element_type=jnp.float32) + b3
    return jax.nn.log_softmax(logits, axis=1)


if __name__ == "__main__":
    key = jax.random.PRNGKey(0)
    k_data, k_params = jax.random.split(key)
    raw_params = init_params(k_params)
    params = prepare_params(*raw_params)   # one-time cast at "model load"

    # --- small batch: exercises the no-grid fast path ---
    batch_small = 2
    x_small = jax.random.normal(
        k_data, (batch_small, N_INPUT_DIM, N_INPUT_LEN), dtype=jnp.float32)
    out_small = jax.block_until_ready(hapticnet_forward(x_small, *params))
    ref_small = reference_forward(x_small, *params)
    assert out_small.shape == (batch_small, N_OUTPUT)
    assert jnp.allclose(out_small, ref_small, atol=2e-3, rtol=2e-3), (
        out_small, ref_small)
    assert jnp.allclose(jnp.sum(jnp.exp(out_small), axis=1), 1.0, atol=1e-3)

    # --- batch > tile: exercises the gridded, batch-tiled path (with a
    # partial trailing block), using a deliberately tiny tile to keep the
    # test small; production default is block_rows=4096. ---
    batch_big = 40
    x_big = jax.random.normal(
        jax.random.PRNGKey(1), (batch_big, N_INPUT_DIM, N_INPUT_LEN),
        dtype=jnp.float32)
    out_big = jax.block_until_ready(
        hapticnet_forward(x_big, *params, block_rows=16))
    ref_big = reference_forward(x_big, *params)
    assert out_big.shape == (batch_big, N_OUTPUT)
    assert jnp.allclose(out_big, ref_big, atol=2e-3, rtol=2e-3), (
        out_big, ref_big)
    assert jnp.allclose(jnp.sum(jnp.exp(out_big), axis=1), 1.0, atol=1e-3)

    print("KERNEL_OK")
</pallas_src>

<mosaic_0001>
module attributes {stable_mosaic.version = 11 : i64} {
  func.func @hapticnet_kernel(%arg0: memref<2x384xf32, #tpu.memory_space<vmem>>, %arg1: memref<384x128xbf16, #tpu.memory_space<vmem>>, %arg2: memref<1x128xf32, #tpu.memory_space<vmem>>, %arg3: memref<128x128xbf16, #tpu.memory_space<vmem>>, %arg4: memref<1x128xf32, #tpu.memory_space<vmem>>, %arg5: memref<128x4xbf16, #tpu.memory_space<vmem>>, %arg6: memref<1x4xf32, #tpu.memory_space<vmem>>, %arg7: memref<2x4xf32, #tpu.memory_space<vmem>>) attributes {dimension_semantics = [], scalar_prefetch = 0 : i64, scratch_operands = 0 : i64, tpu.core_type = #tpu.core_type<tc>} {
    %c0 = arith.constant 0 : index
    %c0_0 = arith.constant 0 : index
    %0 = vector.load %arg0[%c0, %c0_0] : memref<2x384xf32, #tpu.memory_space<vmem>>, vector<2x384xf32>
    %1 = arith.truncf %0 : vector<2x384xf32> to vector<2x384xbf16>
    %c0_1 = arith.constant 0 : index
    %c0_2 = arith.constant 0 : index
    %2 = vector.load %arg1[%c0_1, %c0_2] : memref<384x128xbf16, #tpu.memory_space<vmem>>, vector<384x128xbf16>
    %cst = arith.constant dense<0.000000e+00> : vector<2x128xf32>
    %3 = tpu.matmul %1, %2, %cst {dimension_numbers = #tpu.dot_dimension_numbers<[1], [0], [0], [1], [0, 0, 1, 1], [], []>} : vector<2x384xbf16>, vector<384x128xbf16>, vector<2x128xf32> -> vector<2x128xf32>
    %c0_3 = arith.constant 0 : index
    %c0_4 = arith.constant 0 : index
    %4 = vector.load %arg2[%c0_3, %c0_4] : memref<1x128xf32, #tpu.memory_space<vmem>>, vector<1x128xf32>
    %5 = vector.broadcast %4 : vector<1x128xf32> to vector<2x128xf32>
    %6 = arith.addf %3, %5 : vector<2x128xf32>
    %cst_5 = arith.constant 0.000000e+00 : f32
    %7 = vector.broadcast %cst_5 : f32 to vector<2x128xf32>
    %8 = arith.maximumf %6, %7 : vector<2x128xf32>
    %9 = arith.truncf %8 : vector<2x128xf32> to vector<2x128xbf16>
    %c0_6 = arith.constant 0 : index
    %c0_7 = arith.constant 0 : index
    %10 = vector.load %arg3[%c0_6, %c0_7] : memref<128x128xbf16, #tpu.memory_space<vmem>>, vector<128x128xbf16>
    %cst_8 = arith.constant dense<0.000000e+00> : vector<2x128xf32>
    %11 = tpu.matmul %9, %10, %cst_8 {dimension_numbers = #tpu.dot_dimension_numbers<[1], [0], [0], [1], [0, 0, 1, 1], [], []>} : vector<2x128xbf16>, vector<128x128xbf16>, vector<2x128xf32> -> vector<2x128xf32>
    %c0_9 = arith.constant 0 : index
    %c0_10 = arith.constant 0 : index
    %12 = vector.load %arg4[%c0_9, %c0_10] : memref<1x128xf32, #tpu.memory_space<vmem>>, vector<1x128xf32>
    %13 = vector.broadcast %12 : vector<1x128xf32> to vector<2x128xf32>
    %14 = arith.addf %11, %13 : vector<2x128xf32>
    %cst_11 = arith.constant 0.000000e+00 : f32
    %15 = vector.broadcast %cst_11 : f32 to vector<2x128xf32>
    %16 = arith.maximumf %14, %15 : vector<2x128xf32>
    %17 = arith.truncf %16 : vector<2x128xf32> to vector<2x128xbf16>
    %c0_12 = arith.constant 0 : index
    %c0_13 = arith.constant 0 : index
    %18 = vector.load %arg5[%c0_12, %c0_13] : memref<128x4xbf16, #tpu.memory_space<vmem>>, vector<128x4xbf16>
    %cst_14 = arith.constant dense<0.000000e+00> : vector<2x4xf32>
    %19 = tpu.matmul %17, %18, %cst_14 {dimension_numbers = #tpu.dot_dimension_numbers<[1], [0], [0], [1], [0, 0, 1, 1], [], []>} : vector<2x128xbf16>, vector<128x4xbf16>, vector<2x4xf32> -> vector<2x4xf32>
    %c0_15 = arith.constant 0 : index
    %c0_16 = arith.constant 0 : index
    %20 = vector.load %arg6[%c0_15, %c0_16] : memref<1x4xf32, #tpu.memory_space<vmem>>, vector<1x4xf32>
    %21 = vector.broadcast %20 : vector<1x4xf32> to vector<2x4xf32>
    %22 = arith.addf %19, %21 : vector<2x4xf32>
    %cst_17 = arith.constant dense<0xFF800000> : vector<2xf32>
    %23 = vector.multi_reduction <maximumf>, %22, %cst_17 [1] : vector<2x4xf32> to vector<2xf32>
    %24 = vector.shape_cast %23 : vector<2xf32> to vector<2x1xf32>
    %25 = vector.broadcast %24 : vector<2x1xf32> to vector<2x4xf32>
    %26 = arith.subf %22, %25 : vector<2x4xf32>
    %27 = math.exp %26 : vector<2x4xf32>
    %cst_18 = arith.constant dense<0.000000e+00> : vector<2xf32>
    %28 = vector.multi_reduction <add>, %27, %cst_18 [1] : vector<2x4xf32> to vector<2xf32>
    %29 = vector.shape_cast %28 : vector<2xf32> to vector<2x1xf32>
    %30 = math.log %29 : vector<2x1xf32>
    %31 = vector.broadcast %30 : vector<2x1xf32> to vector<2x4xf32>
    %32 = arith.subf %26, %31 : vector<2x4xf32>
    %c0_19 = arith.constant 0 : index
    %c0_20 = arith.constant 0 : index
    %33 = vector.load %arg7[%c0_19, %c0_20] : memref<2x4xf32, #tpu.memory_space<vmem>>, vector<2x4xf32>
    tpu.vector_store %arg7[%c0_19, %c0_20], %32 {strides = array<i32>} : memref<2x4xf32, #tpu.memory_space<vmem>>, vector<2x4xf32>,
    return
  }
}

</mosaic_0001>

<llo_original>
// kernel: hapticnet_forward.1
$region0: #{hapticnet_forward.1}
  #allocation0 [shape = 'u32[]', space=smem, size = 0x4, offset = 0x4, fixed_abs, tag = 'smem constant byte address 0x4 - core index']
  #allocation1 [shape = 'u32[72,128]{1,0:T(1,128)}', space=vmem, size = 0x9000, scoped, tag = 'internal scratch']
  %s0 = inlined_call_operand.vmem [shape: f32[2,384], index: 0, kind: input, shape index: {}]
  %s1 = inlined_call_operand.hbm [shape: bf16[384,128], index: 1, kind: input, shape index: {}]
  %s2 = inlined_call_operand.vmem [shape: f32[1,128], index: 2, kind: input, shape index: {}]
  %s3 = inlined_call_operand.vmem [shape: bf16[128,128], index: 3, kind: input, shape index: {}]
  %s4 = inlined_call_operand.vmem [shape: f32[1,128], index: 4, kind: input, shape index: {}]
  %s5 = inlined_call_operand.vmem [shape: bf16[128,4], index: 5, kind: input, shape index: {}]
  %s6 = inlined_call_operand.vmem [shape: f32[1,4], index: 6, kind: input, shape index: {}]
  %s7 = inlined_call_operand.hbm [shape: f32[2,4], index: 7, kind: output, shape index: {}]
  %s8 = sld [smem:[#allocation0]]
  $region42: #{hapticnet_forward.1} parent=0
    _
  %s10 = ssub.s32 1, %s8
  %s11 = scalar_select 0, %s10, %s8
  $region1: #{hapticnet_forward.1} parent=0
    #allocation2 [shape = 'u8[98304]{0}', space=vmem, size = 0x18000, scoped, tag = 'input window, operand 1, single buffered']
    #allocation3 [shape = 's32[1]{0}', space=sflag, size = 0x4, scoped, tag = 'scoped memory for hapticnet_forward.1']
    #allocation4 [shape = 's32[1]{0}', space=sflag, size = 0x4, scoped, tag = 'scoped memory for hapticnet_forward.1']
    #allocation5 [shape = 'u8[1024]{0}', space=vmem, size = 0x400, scoped, tag = 'output window, operand 0, single buffered']
    %12 = vsyncpa [#allocation3], 0
    %13 = vsyncpa [#allocation4], 0
    // Predicated region
    $region2: #{hapticnet_forward.1} parent=1 // pred_check
      _
    $region3: #{hapticnet_forward.1} parent=1 // pred_check_branch
      %15 = sbr.rel (0) target = $region5
    $region4: #{hapticnet_forward.1} parent=1 // pred_region
      _
    $region5: #{hapticnet_forward.1} parent=1 // pred_fallthru
      _
    // Predicated region
    $region6: #{hapticnet_forward.1} parent=1 // pred_check
      _
    $region7: #{hapticnet_forward.1} parent=1 // pred_check_branch
      %17 = sbr.rel (0) target = $region9
    $region8: #{hapticnet_forward.1} parent=1 // pred_region
      %19 = vsyncadd [#allocation3], 0
      %s20 = sshll.u32 %s1, 4
      %s21 = int_to_ptr.hbm [resolvable:$true] %s20
      %s22 = sshll.u32 [#allocation2], 4
      %s23 = int_to_ptr.vmem [resolvable:$true] %s22
      %28 = dma.hbm_to_vmem [thread:$0]  %s21, 3072, %s23, [#allocation3], 64, 64, 4
    $region9: #{hapticnet_forward.1} parent=1 // pred_fallthru
      _
    // Predicated region
    $region10: #{hapticnet_forward.1} parent=1 // pred_check
      _
    $region11: #{hapticnet_forward.1} parent=1 // pred_check_branch
      %30 = sbr.rel (0) target = $region13
    $region12: #{hapticnet_forward.1} parent=1 // pred_region
      _
    $region13: #{hapticnet_forward.1} parent=1 // pred_fallthru
      _
    // Predicated region
    $region14: #{hapticnet_forward.1} parent=1 // pred_check
      _
    $region15: #{hapticnet_forward.1} parent=1 // pred_check_branch
      %32 = sbr.rel (0) target = $region17
    $region16: #{hapticnet_forward.1} parent=1 // pred_region
      _
    $region17: #{hapticnet_forward.1} parent=1 // pred_fallthru
      _
    // Predicated region
    $region18: #{hapticnet_forward.1} parent=1 // pred_check
      _
    $region19: #{hapticnet_forward.1} parent=1 // pred_check_branch
      %34 = sbr.rel (0) target = $region21
    $region20: #{hapticnet_forward.1} parent=1 // pred_region
      _
    $region21: #{hapticnet_forward.1} parent=1 // pred_fallthru
      _
    // Predicated region
    $region22: #{hapticnet_forward.1} parent=1 // pred_check
      _
    $region23: #{hapticnet_forward.1} parent=1 // pred_check_branch
      %36 = sbr.rel (0) target = $region25
    $region24: #{hapticnet_forward.1} parent=1 // pred_region
      _
    $region25: #{hapticnet_forward.1} parent=1 // pred_fallthru
      _
    // Predicated region
    $region26: #{hapticnet_forward.1} parent=1 // pred_check
      _
    $region27: #{hapticnet_forward.1} parent=1 // pred_check_branch
      %38 = sbr.rel (0) target = $region29
    $region28: #{hapticnet_forward.1} parent=1 // pred_region
      _
    $region29: #{hapticnet_forward.1} parent=1 // pred_fallthru
      _
    // Predicated region
    $region30: #{hapticnet_forward.1} parent=1 // pred_check
      _
    $region31: #{hapticnet_forward.1} parent=1 // pred_check_branch
      %40 = sbr.rel (0) target = $region33
    $region32: #{hapticnet_forward.1} parent=1 // pred_region
      %42 = dma.done [#allocation3], 3072
    $region33: #{hapticnet_forward.1} parent=1 // pred_fallthru
      _
    %v43 = vld [vmem:[%s0] sm:$0x3f]
    %45 = vst [vmem:[#allocation1] ss:$4 sm:$0xff] %v43
    %v46 = vld.sshfl [vmem:[#allocation1] sm:$0xff pattern:$0x73625140]
    %v47 = vld.sshfl [vmem:[#allocation1 + $0x8] sm:$0xff pattern:$0x73625140]
    %v48 = vld.sshfl [vmem:[#allocation1 + $0x10] sm:$0xff pattern:$0x73625140]
    %v52 = vpack.c.bf16 %v46, %v46
    %v53 = vpack.c.bf16 %v47, %v47
    %v54 = vpack.c.bf16 %v48, %v48
    %v55 = vld [vmem:[#allocation2] sm:$0xf]
    %v56 = vld [vmem:[#allocation2 + $0x4] sm:$0xf]
    %v57 = vld [vmem:[#allocation2 + $0x8] sm:$0xf]
    %v58 = vld [vmem:[#allocation2 + $0xc] sm:$0xf]
    %v59 = vld [vmem:[#allocation2 + $0x10] sm:$0xf]
    %v60 = vld [vmem:[#allocation2 + $0x14] sm:$0xf]
    %v61 = vld [vmem:[#allocation2 + $0x18] sm:$0xf]
    %v62 = vld [vmem:[#allocation2 + $0x1c] sm:$0xf]
    %v63 = vld [vmem:[#allocation2 + $0x20] sm:$0xf]
    %v64 = vld [vmem:[#allocation2 + $0x24] sm:$0xf]
    %v65 = vld [vmem:[#allocation2 + $0x28] sm:$0xf]
    %v66 = vld [vmem:[#allocation2 + $0x2c] sm:$0xf]
    %v67 = vld [vmem:[#allocation2 + $0x30] sm:$0xf]
    %v68 = vld [vmem:[#allocation2 + $0x34] sm:$0xf]
    %v69 = vld [vmem:[#allocation2 + $0x38] sm:$0xf]
    %v70 = vld [vmem:[#allocation2 + $0x3c] sm:$0xf]
    %v71 = vld [vmem:[#allocation2 + $0x40] sm:$0xf]
    %v72 = vld [vmem:[#allocation2 + $0x44] sm:$0xf]
    %v73 = vld [vmem:[#allocation2 + $0x48] sm:$0xf]
    %v74 = vld [vmem:[#allocation2 + $0x4c] sm:$0xf]
    %v75 = vld [vmem:[#allocation2 + $0x50] sm:$0xf]
    %v76 = vld [vmem:[#allocation2 + $0x54] sm:$0xf]
    %v77 = vld [vmem:[#allocation2 + $0x58] sm:$0xf]
    %v78 = vld [vmem:[#allocation2 + $0x5c] sm:$0xf]
    %v79 = vld [vmem:[#allocation2 + $0x60] sm:$0xf]
    %v80 = vld [vmem:[#allocation2 + $0x64] sm:$0xf]
    %v81 = vld [vmem:[#allocation2 + $0x68] sm:$0xf]
    %v82 = vld [vmem:[#allocation2 + $0x6c] sm:$0xf]
    %v83 = vld [vmem:[#allocation2 + $0x70] sm:$0xf]
    %v84 = vld [vmem:[#allocation2 + $0x74] sm:$0xf]
    %v85 = vld [vmem:[#allocation2 + $0x78] sm:$0xf]
    %v86 = vld [vmem:[#allocation2 + $0x7c] sm:$0xf]
    %v87 = vld [vmem:[#allocation2 + $0x80] sm:$0xf]
    %v88 = vld [vmem:[#allocation2 + $0x84] sm:$0xf]
    %v89 = vld [vmem:[#allocation2 + $0x88] sm:$0xf]
    %v90 = vld [vmem:[#allocation2 + $0x8c] sm:$0xf]
    %v91 = vld [vmem:[#allocation2 + $0x90] sm:$0xf]
    %v92 = vld [vmem:[#allocation2 + $0x94] sm:$0xf]
    %v93 = vld [vmem:[#allocation2 + $0x98] sm:$0xf]
    %v94 = vld [vmem:[#allocation2 + $0x9c] sm:$0xf]
    %v95 = vld [vmem:[#allocation2 + $0xa0] sm:$0xf]
    %v96 = vld [vmem:[#allocation2 + $0xa4] sm:$0xf]
    %v97 = vld [vmem:[#allocation2 + $0xa8] sm:$0xf]
    %v98 = vld [vmem:[#allocation2 + $0xac] sm:$0xf]
    %v99 = vld [vmem:[#allocation2 + $0xb0] sm:$0xf]
    %v100 = vld [vmem:[#allocation2 + $0xb4] sm:$0xf]
    %v101 = vld [vmem:[#allocation2 + $0xb8] sm:$0xf]
    %v102 = vld [vmem:[#allocation2 + $0xbc] sm:$0xf]
    %v103 = vld [vmem:[%s2] sm:$0x1]
    %v105 = vperm.slane %v103, 0
    %v155 = vunpack.c.l.b16 %v55
    %v156 = vunpack.c.l.b16 %v56
    %v157 = vunpack.c.l.b16 %v57
    %v158 = vunpack.c.l.b16 %v58
    %v159 = vunpack.c.l.b16 %v59
    %v160 = vunpack.c.l.b16 %v60
    %v161 = vunpack.c.l.b16 %v61
    %v162 = vunpack.c.l.b16 %v62
    %v163 = vunpack.c.l.b16 %v63
    %v164 = vunpack.c.l.b16 %v64
    %v165 = vunpack.c.l.b16 %v65
    %v166 = vunpack.c.l.b16 %v66
    %v167 = vunpack.c.l.b16 %v67
    %v168 = vunpack.c.l.b16 %v68
    %v169 = vunpack.c.l.b16 %v69
    %v170 = vunpack.c.l.b16 %v70
    %v171 = vunpack.c.l.b16 %v71
    %v172 = vunpack.c.l.b16 %v72
    %v173 = vunpack.c.l.b16 %v73
    %v174 = vunpack.c.l.b16 %v74
    %v175 = vunpack.c.l.b16 %v75
    %v176 = vunpack.c.l.b16 %v76
    %v177 = vunpack.c.l.b16 %v77
    %v178 = vunpack.c.l.b16 %v78
    %v179 = vunpack.c.l.b16 %v79
    %v180 = vunpack.c.l.b16 %v80
    %v181 = vunpack.c.l.b16 %v81
    %v182 = vunpack.c.l.b16 %v82
    %v183 = vunpack.c.l.b16 %v83
    %v184 = vunpack.c.l.b16 %v84
    %v185 = vunpack.c.l.b16 %v85
    %v186 = vunpack.c.l.b16 %v86
    %v187 = vunpack.c.l.b16 %v87
    %v188 = vunpack.c.l.b16 %v88
    %v189 = vunpack.c.l.b16 %v89
    %v190 = vunpack.c.l.b16 %v90
    %v191 = vunpack.c.l.b16 %v91
    %v192 = vunpack.c.l.b16 %v92
    %v193 = vunpack.c.l.b16 %v93
    %v194 = vunpack.c.l.b16 %v94
    %v195 = vunpack.c.l.b16 %v95
    %v196 = vunpack.c.l.b16 %v96
    %v197 = vunpack.c.l.b16 %v97
    %v198 = vunpack.c.l.b16 %v98
    %v199 = vunpack.c.l.b16 %v99
    %v200 = vunpack.c.l.b16 %v100
    %v201 = vunpack.c.l.b16 %v101
    %v202 = vunpack.c.l.b16 %v102
    %v203 = vpack.c.b16 %v156, %v155
    %v204 = vpack.c.b16 %v158, %v157
    %v205 = vpack.c.b16 %v160, %v159
    %v206 = vpack.c.b16 %v162, %v161
    %v207 = vpack.c.b16 %v164, %v163
    %v208 = vpack.c.b16 %v166, %v165
    %v209 = vpack.c.b16 %v168, %v167
    %v210 = vpack.c.b16 %v170, %v169
    %v211 = vpack.c.b16 %v172, %v171
    %v212 = vpack.c.b16 %v174, %v173
    %v213 = vpack.c.b16 %v176, %v175
    %v214 = vpack.c.b16 %v178, %v177
    %v215 = vpack.c.b16 %v180, %v179
    %v216 = vpack.c.b16 %v182, %v181
    %v217 = vpack.c.b16 %v184, %v183
    %v218 = vpack.c.b16 %v186, %v185
    %v219 = vpack.c.b16 %v188, %v187
    %v220 = vpack.c.b16 %v190, %v189
    %v221 = vpack.c.b16 %v192, %v191
    %v222 = vpack.c.b16 %v194, %v193
    %v223 = vpack.c.b16 %v196, %v195
    %v224 = vpack.c.b16 %v198, %v197
    %v225 = vpack.c.b16 %v200, %v199
    %v226 = vpack.c.b16 %v202, %v201
    %251 = vmatpush.bf16.msra.mxu0 %v210
    %252 = vmatpush.bf16.msra.mxu0 %v209
    %253 = vmatpush.bf16.msra.mxu0 %v208
    %254 = vmatpush.bf16.msra.mxu0 %v207
    %255 = vmatpush.bf16.msra.mxu0 %v206
    %256 = vmatpush.bf16.msra.mxu0 %v205
    %257 = vmatpush.bf16.msra.mxu0 %v204
    %258 = vmatpush.bf16.msra.mxu0 %v203
    %259 = vmatmul.bf16.gmra.mxu0 %v52
    %v260 = vpop.f32.mrf.mxu0
    %v261 = vadd.f32 %v105, %v260
    %v262 = vpop.f32.mrf.mxu0
    %263 = vdwg.mxu0
    %264 = vmatpush.bf16.msra.mxu0 %v218
    %265 = vmatpush.bf16.msra.mxu0 %v217
    %266 = vmatpush.bf16.msra.mxu0 %v216
    %267 = vmatpush.bf16.msra.mxu0 %v215
    %268 = vmatpush.bf16.msra.mxu0 %v214
    %269 = vmatpush.bf16.msra.mxu0 %v213
    %270 = vmatpush.bf16.msra.mxu0 %v212
    %271 = vmatpush.bf16.msra.mxu0 %v211
    %272 = vmatmul.bf16.gmra.mxu0 %v53
    %v273 = vpop.f32.mrf.mxu0
    %v274 = vadd.f32 %v261, %v273
    %v275 = vpop.f32.mrf.mxu0
    %276 = vdwg.mxu0
    %277 = vmatpush.bf16.msra.mxu0 %v226
    %278 = vmatpush.bf16.msra.mxu0 %v225
    %279 = vmatpush.bf16.msra.mxu0 %v224
    %280 = vmatpush.bf16.msra.mxu0 %v223
    %281 = vmatpush.bf16.msra.mxu0 %v222
    %282 = vmatpush.bf16.msra.mxu0 %v221
    %283 = vmatpush.bf16.msra.mxu0 %v220
    %284 = vmatpush.bf16.msra.mxu0 %v219
    %285 = vmatmul.bf16.gmra.mxu0 %v54
    %v286 = vpop.f32.mrf.mxu0
    %v287 = vadd.f32 %v274, %v286
    %v288 = vpop.f32.mrf.mxu0
    %289 = vdwg.mxu0
    %v290 = vmax.f32 %v287, 0.0
    %v291 = vpack.c.bf16 %v290, %v290
    %v292 = vld [vmem:[%s3] sm:$0xf]
    %v293 = vld [vmem:[%s3 + $0x4] sm:$0xf]
    %v294 = vld [vmem:[%s3 + $0x8] sm:$0xf]
    %v295 = vld [vmem:[%s3 + $0xc] sm:$0xf]
    %v296 = vld [vmem:[%s3 + $0x10] sm:$0xf]
    %v297 = vld [vmem:[%s3 + $0x14] sm:$0xf]
    %v298 = vld [vmem:[%s3 + $0x18] sm:$0xf]
    %v299 = vld [vmem:[%s3 + $0x1c] sm:$0xf]
    %v300 = vld [vmem:[%s3 + $0x20] sm:$0xf]
    %v301 = vld [vmem:[%s3 + $0x24] sm:$0xf]
    %v302 = vld [vmem:[%s3 + $0x28] sm:$0xf]
    %v303 = vld [vmem:[%s3 + $0x2c] sm:$0xf]
    %v304 = vld [vmem:[%s3 + $0x30] sm:$0xf]
    %v305 = vld [vmem:[%s3 + $0x34] sm:$0xf]
    %v306 = vld [vmem:[%s3 + $0x38] sm:$0xf]
    %v307 = vld [vmem:[%s3 + $0x3c] sm:$0xf]
    %v308 = vld [vmem:[%s4] sm:$0x1]
    %v310 = vperm.slane %v308, 0
    %v328 = vunpack.c.l.b16 %v292
    %v329 = vunpack.c.l.b16 %v293
    %v330 = vunpack.c.l.b16 %v294
    %v331 = vunpack.c.l.b16 %v295
    %v332 = vunpack.c.l.b16 %v296
    %v333 = vunpack.c.l.b16 %v297
    %v334 = vunpack.c.l.b16 %v298
    %v335 = vunpack.c.l.b16 %v299
    %v336 = vunpack.c.l.b16 %v300
    %v337 = vunpack.c.l.b16 %v301
    %v338 = vunpack.c.l.b16 %v302
    %v339 = vunpack.c.l.b16 %v303
    %v340 = vunpack.c.l.b16 %v304
    %v341 = vunpack.c.l.b16 %v305
    %v342 = vunpack.c.l.b16 %v306
    %v343 = vunpack.c.l.b16 %v307
    %v344 = vpack.c.b16 %v329, %v328
    %v345 = vpack.c.b16 %v331, %v330
    %v346 = vpack.c.b16 %v333, %v332
    %v347 = vpack.c.b16 %v335, %v334
    %v348 = vpack.c.b16 %v337, %v336
    %v349 = vpack.c.b16 %v339, %v338
    %v350 = vpack.c.b16 %v341, %v340
    %v351 = vpack.c.b16 %v343, %v342
    %360 = vmatpush.bf16.msra.mxu0 %v351
    %361 = vmatpush.bf16.msra.mxu0 %v350
    %362 = vmatpush.bf16.msra.mxu0 %v349
    %363 = vmatpush.bf16.msra.mxu0 %v348
    %364 = vmatpush.bf16.msra.mxu0 %v347
    %365 = vmatpush.bf16.msra.mxu0 %v346
    %366 = vmatpush.bf16.msra.mxu0 %v345
    %367 = vmatpush.bf16.msra.mxu0 %v344
    %368 = vmatmul.bf16.gmra.mxu0 %v291
    %v369 = vpop.f32.mrf.mxu0
    %v370 = vadd.f32 %v310, %v369
    %v371 = vpop.f32.mrf.mxu0
    %372 = vdwg.mxu0
    %v373 = vmax.f32 %v370, 0.0
    %v374 = vpack.c.bf16 %v373, %v373
    %v375 = vld [vmem:[%s5] sm:$0xf]
    %v376 = vld [vmem:[%s5 + $0x4] sm:$0xf]
    %v377 = vld [vmem:[%s5 + $0x8] sm:$0xf]
    %v378 = vld [vmem:[%s5 + $0xc] sm:$0xf]
    %v379 = vld [vmem:[%s5 + $0x10] sm:$0xf]
    %v380 = vld [vmem:[%s5 + $0x14] sm:$0xf]
    %v381 = vld [vmem:[%s5 + $0x18] sm:$0xf]
    %v382 = vld [vmem:[%s5 + $0x1c] sm:$0xf]
    %v383 = vld [vmem:[%s5 + $0x20] sm:$0xf]
    %v384 = vld [vmem:[%s5 + $0x24] sm:$0xf]
    %v385 = vld [vmem:[%s5 + $0x28] sm:$0xf]
    %v386 = vld [vmem:[%s5 + $0x2c] sm:$0xf]
    %v387 = vld [vmem:[%s5 + $0x30] sm:$0xf]
    %v388 = vld [vmem:[%s5 + $0x34] sm:$0xf]
    %v389 = vld [vmem:[%s5 + $0x38] sm:$0xf]
    %v390 = vld [vmem:[%s5 + $0x3c] sm:$0xf]
    %v391 = vld [vmem:[%s6] sm:$0x1]
    %v393 = vperm.slane %v391, 0
    %v411 = vunpack.c.l.b16 %v375
    %v412 = vunpack.c.l.b16 %v376
    %v413 = vunpack.c.l.b16 %v377
    %v414 = vunpack.c.l.b16 %v378
    %v415 = vunpack.c.l.b16 %v379
    %v416 = vunpack.c.l.b16 %v380
    %v417 = vunpack.c.l.b16 %v381
    %v418 = vunpack.c.l.b16 %v382
    %v419 = vunpack.c.l.b16 %v383
    %v420 = vunpack.c.l.b16 %v384
    %v421 = vunpack.c.l.b16 %v385
    %v422 = vunpack.c.l.b16 %v386
    %v423 = vunpack.c.l.b16 %v387
    %v424 = vunpack.c.l.b16 %v388
    %v425 = vunpack.c.l.b16 %v389
    %v426 = vunpack.c.l.b16 %v390
    %v427 = vpack.c.b16 %v412, %v411
    %v428 = vpack.c.b16 %v414, %v413
    %v429 = vpack.c.b16 %v416, %v415
    %v430 = vpack.c.b16 %v418, %v417
    %v431 = vpack.c.b16 %v420, %v419
    %v432 = vpack.c.b16 %v422, %v421
    %v433 = vpack.c.b16 %v424, %v423
    %v434 = vpack.c.b16 %v426, %v425
    %443 = vmatpush.bf16.msra.mxu0 %v434
    %444 = vmatpush.bf16.msra.mxu0 %v433
    %445 = vmatpush.bf16.msra.mxu0 %v432
    %446 = vmatpush.bf16.msra.mxu0 %v431
    %447 = vmatpush.bf16.msra.mxu0 %v430
    %448 = vmatpush.bf16.msra.mxu0 %v429
    %449 = vmatpush.bf16.msra.mxu0 %v428
    %450 = vmatpush.bf16.msra.mxu0 %v427
    %451 = vmatmul.bf16.gmra.mxu0 %v374
    %v452 = vpop.f32.mrf.mxu0
    %v453 = vadd.f32 %v393, %v452
    %v454 = vpop.f32.mrf.mxu0
    %455 = vdwg.mxu0
    %vm456 = vcmask 25600
    %v457 = vsel %vm456, %v453, -inf
    %458 = vmax.xlane.f32.xlu0 %v457
    %v459 = vpop.xlane.xlu0 %458
    %v460 = vsub.f32 %v453, %v459
    %v461 = vmul.f32 %v460, 1.442695
    %v462 = vpow.pop %v461
    %v463 = vsel %vm456, %v462, 0.0
    %464 = vadd.xlane.f32.xlu0 %v463
    %v465 = vpop.xlane.xlu0 %464
    %v466 = vlog2.pop %v465
    %v467 = vmul.f32 %v466, 0.6931472
    %v468 = vsub.f32 %v460, %v467
    %469 = vst.msk [vmem:[#allocation5] sm:$0x3] %vm456, %v468
    // Predicated region
    $region34: #{hapticnet_forward.1} parent=1 // pred_check
      _
    $region35: #{hapticnet_forward.1} parent=1 // pred_check_branch
      %471 = sbr.rel (0) target = $region37
    $region36: #{hapticnet_forward.1} parent=1 // pred_region
      %473 = vsyncadd [#allocation4], 0
      %s475 = sshll.u32 [#allocation5], 4
      %s476 = int_to_ptr.vmem [resolvable:$true] %s475
      %s477 = sshll.u32 %s7, 4
      %s478 = int_to_ptr.hbm [resolvable:$true] %s477
      %480 = dma.vmem_to_hbm [thread:$0]  %s476, 32, %s478, [#allocation4]
    $region37: #{hapticnet_forward.1} parent=1 // pred_fallthru
      _
    // Predicated region
    $region38: #{hapticnet_forward.1} parent=1 // pred_check
      _
    $region39: #{hapticnet_forward.1} parent=1 // pred_check_branch
      %482 = sbr.rel (0) target = $region41
    $region40: #{hapticnet_forward.1} parent=1 // pred_region
      %484 = dma.done [#allocation4], 32
    $region41: #{hapticnet_forward.1} parent=1 // pred_fallthru
      _
    %485 = vsyncpa [#allocation3], 1
    %486 = vsyncpa [#allocation4], 1

</llo_original>
